<compile_context>
chip_gen: v7x
topology: tpu7x:2x2x1
jax: 0.10.0
libtpu: 0.0.40
codegen_flags: <defaults>
</compile_context>

<pallas_src>
import functools
import math

import jax
import jax.numpy as jnp
from jax.experimental import pallas as pl
from jax.experimental.pallas import tpu as pltpu


def _build_pe_table(d_model: int, max_len: int) -> jnp.ndarray:
    """Same math as the PyTorch __init__, stored as (max_len, d_model) f32."""
    position = jnp.arange(max_len, dtype=jnp.float32)[:, None]              # (max_len, 1)
    div_term = jnp.exp(jnp.arange(0, d_model, 2, dtype=jnp.float32)
                       * (-math.log(10000.0) / d_model))                    # (d_model/2,)
    pe = jnp.zeros((max_len, d_model), dtype=jnp.float32)
    pe = pe.at[:, 0::2].set(jnp.sin(position * div_term))
    pe = pe.at[:, 1::2].set(jnp.cos(position * div_term))
    return pe


def _pe_kernel(seed_ref, x_ref, pe_ref, o_ref, *, dropout_p: float, apply_dropout: bool):
    # x_ref: (TS, B, D); pe_ref: (TS, D) -> broadcast over the batch axis.
    y = x_ref[...].astype(jnp.float32) + pe_ref[...].astype(jnp.float32)[:, None, :]

    if apply_dropout and dropout_p > 0.0:
        # Inverted dropout (train mode).  Stateless counter-based hash:
        # per-element uniform bits from murmur3 finalizer of the GLOBAL element
        # index mixed with the seed.  Pure 32-bit VPU integer ops -> lowers on
        # TPU and in interpret mode; mask is tiling-invariant.
        # TODO(synk): cannot bit-match torch's dropout RNG stream; keep-prob
        # and 1/(1-p) scaling semantics match.
        ts, b, d = y.shape
        row = jax.lax.broadcasted_iota(jnp.int32, y.shape, 0)
        col = jax.lax.broadcasted_iota(jnp.int32, y.shape, 1)
        dep = jax.lax.broadcasted_iota(jnp.int32, y.shape, 2)
        g_row = pl.program_id(0) * ts + row                       # global seq position
        ctr = (g_row * b + col) * d + dep                         # global element index
        u = ctr.astype(jnp.uint32) + seed_ref[0].astype(jnp.uint32) * jnp.uint32(0x9E3779B9)
        u = u ^ (u >> 16)
        u = u * jnp.uint32(0x7FEB352D)
        u = u ^ (u >> 15)
        u = u * jnp.uint32(0x846CA68B)
        u = u ^ (u >> 16)
        # Top 24 bits -> exact f32 uniform in [0, 1); int32 cast is safe since
        # (u >> 8) < 2^24, and avoids any unsigned-compare corner cases.
        r = (u >> 8).astype(jnp.int32).astype(jnp.float32) * jnp.float32(1.0 / (1 << 24))
        keep = r >= jnp.float32(dropout_p)
        y = jnp.where(keep, y * (1.0 / (1.0 - dropout_p)), 0.0)

    o_ref[...] = y.astype(o_ref.dtype)


def positional_encoding_forward(x, pe, *, dropout_p: float = 0.1,
                                training: bool = False, seed: int = 0,
                                tile_seq: int | None = None):
    """x: (seq_len, batch, d_model); pe: (max_len, d_model) f32 table."""
    S, B, D = x.shape
    max_len, d_pe = pe.shape
    assert d_pe == D and max_len >= S

    itemsize = jnp.dtype(x.dtype).itemsize
    if tile_seq is None:
        # ~4 MiB per x/out tile keeps double-buffered in+out+pe comfortably
        # inside the default scoped VMEM on v5e/v6e/v7x.
        tile_seq = max(8, (4 * 1024 * 1024) // max(1, B * D * itemsize))
    tile_seq = int(min(tile_seq, S))

    if S >= 8:
        # pe's (tile_seq, D) block puts tile_seq on the sublane axis:
        # keep it a multiple of 8.
        tile_seq = max(8, (tile_seq // 8) * 8)
        pe_arr = pe
    else:
        # Tiny-sequence fallback: one block; slice pe so its block shape
        # equals the (sliced) array shape, satisfying the (8,128) rule.
        tile_seq = S
        pe_arr = pe[:S]

    num_tiles = pl.cdiv(S, tile_seq)
    kernel = functools.partial(_pe_kernel, dropout_p=float(dropout_p),
                               apply_dropout=bool(training))
    seed_arr = jnp.array([seed], dtype=jnp.int32)

    return pl.pallas_call(
        kernel,
        out_shape=jax.ShapeDtypeStruct((S, B, D), x.dtype),
        grid_spec=pltpu.PrefetchScalarGridSpec(
            num_scalar_prefetch=1,          # seed lands in SMEM
            grid=(num_tiles,),
            in_specs=[
                pl.BlockSpec((tile_seq, B, D), lambda i, seed: (i, 0, 0)),
                pl.BlockSpec((tile_seq, D), lambda i, seed: (i, 0)),
            ],
            out_specs=pl.BlockSpec((tile_seq, B, D), lambda i, seed: (i, 0, 0)),
        ),
        # x (operand index 1, after the prefetched seed) aliases the output:
        # same shape/dtype, fully overwritten -> saves an HBM allocation.
        input_output_aliases={1: 0},
        compiler_params=pltpu.CompilerParams(
            dimension_semantics=("parallel",)),
    )(seed_arr, x, pe_arr)


if __name__ == "__main__":
    # Small shapes consistent with forward(): x is [seq_len, batch, d_model].
    seq_len, batch, d_model, max_len = 32, 2, 32, 64
    key = jax.random.PRNGKey(0)
    x = jax.random.normal(key, (seq_len, batch, d_model), dtype=jnp.float32)

    pe = _build_pe_table(d_model, max_len)
    ref = x + pe[:seq_len][:, None, :]          # pure-JAX eval-mode reference

    # Eval-mode forward (dropout is identity) — deterministic, checkable.
    # tile_seq=8 forces a 4-step grid so the pipelined path is exercised.
    out = positional_encoding_forward(x, pe, dropout_p=0.1, training=False,
                                      tile_seq=8)
    out = jax.block_until_ready(out)
    assert out.shape == (seq_len, batch, d_model)
    assert jnp.allclose(out, ref, atol=1e-6, rtol=1e-6)

    # Train-mode forward: check dropout keep-rate and 1/(1-p) scaling loosely
    # (exact mask cannot match torch's RNG stream).
    p = 0.1
    out_tr = positional_encoding_forward(x, pe, dropout_p=p, training=True,
                                         seed=1234, tile_seq=8)
    out_tr = jax.block_until_ready(out_tr)
    assert out_tr.shape == (seq_len, batch, d_model)
    assert bool(jnp.all(jnp.isfinite(out_tr)))
    dropped_frac = float(jnp.mean((out_tr == 0.0).astype(jnp.float32)))
    assert 0.0 < dropped_frac < 0.5, f"unexpected dropout fraction {dropped_frac}"
    scaled_ref = ref * (1.0 / (1.0 - p))
    recon = jnp.where(out_tr == 0.0, scaled_ref, out_tr)
    assert jnp.allclose(recon, scaled_ref, atol=1e-4, rtol=1e-4)

    print("KERNEL_OK")
</pallas_src>

<mosaic_0001>
module attributes {stable_mosaic.version = 11 : i64} {
  func.func @_pe_kernel(%arg0: i32, %arg1: memref<1xi32, #tpu.memory_space<smem>>, %arg2: memref<8x2x32xf32, #tpu.memory_space<vmem>>, %arg3: memref<8x32xf32, #tpu.memory_space<vmem>>, %arg4: memref<8x2x32xf32, #tpu.memory_space<vmem>>) attributes {dimension_semantics = [#tpu.dimension_semantics<parallel>], iteration_bounds = array<i64: 4>, scalar_prefetch = 1 : i64, scratch_operands = 0 : i64, tpu.core_type = #tpu.core_type<tc>, window_params = [{transform_indices = @transform_0, window_bounds = array<i64: 8, 2, 32>}, {transform_indices = @transform_1, window_bounds = array<i64: 8, 32>}, {transform_indices = @transform_2, window_bounds = array<i64: 8, 2, 32>}]} {
    %c0 = arith.constant 0 : index
    %c0_0 = arith.constant 0 : index
    %c0_1 = arith.constant 0 : index
    %0 = vector.load %arg2[%c0, %c0_0, %c0_1] : memref<8x2x32xf32, #tpu.memory_space<vmem>>, vector<8x2x32xf32>
    %c0_2 = arith.constant 0 : index
    %c0_3 = arith.constant 0 : index
    %1 = vector.load %arg3[%c0_2, %c0_3] : memref<8x32xf32, #tpu.memory_space<vmem>>, vector<8x32xf32>
    %2 = vector.shape_cast %1 : vector<8x32xf32> to vector<8x1x32xf32>
    %3 = vector.broadcast %2 : vector<8x1x32xf32> to vector<8x2x32xf32>
    %4 = arith.addf %0, %3 : vector<8x2x32xf32>
    %c0_4 = arith.constant 0 : index
    %c0_5 = arith.constant 0 : index
    %c0_6 = arith.constant 0 : index
    %5 = vector.load %arg4[%c0_4, %c0_5, %c0_6] : memref<8x2x32xf32, #tpu.memory_space<vmem>>, vector<8x2x32xf32>
    tpu.vector_store %arg4[%c0_4, %c0_5, %c0_6], %4 {strides = array<i32>} : memref<8x2x32xf32, #tpu.memory_space<vmem>>, vector<8x2x32xf32>,
    return
  }
  func.func @transform_0(%arg0: i32, %arg1: memref<1xi32, #tpu.memory_space<smem>>) -> (i32, i32, i32) {
    %c0_i32 = arith.constant 0 : i32
    %c0_i32_0 = arith.constant 0 : i32
    %c0_i32_1 = arith.constant 0 : i32
    return %arg0, %c0_i32, %c0_i32_0 : i32, i32, i32
  }
  func.func @transform_1(%arg0: i32, %arg1: memref<1xi32, #tpu.memory_space<smem>>) -> (i32, i32) {
    %c0_i32 = arith.constant 0 : i32
    %c0_i32_0 = arith.constant 0 : i32
    return %arg0, %c0_i32 : i32, i32
  }
  func.func @transform_2(%arg0: i32, %arg1: memref<1xi32, #tpu.memory_space<smem>>) -> (i32, i32, i32) {
    %c0_i32 = arith.constant 0 : i32
    %c0_i32_0 = arith.constant 0 : i32
    %c0_i32_1 = arith.constant 0 : i32
    return %arg0, %c0_i32, %c0_i32_0 : i32, i32, i32
  }
}

</mosaic_0001>

<llo_original>
// kernel: tpu_custom_call.1
$region0: #{tpu_custom_call.1}
  #allocation0 [shape = 'u32[]', space=smem, size = 0x4, offset = 0x4, fixed_abs, tag = 'smem constant byte address 0x4 - core index']
  #allocation1 [shape = 'u32[144,128]{1,0:T(1,128)}', space=vmem, size = 0x12000, scoped, tag = 'internal scratch']
  #allocation2 [shape = 's32[1]{0}', space=sflag, size = 0x4, scoped, tag = 'scoped memory for tpu_custom_call.1']
  #allocation3 [shape = 's32[1]{0:T(128)S(6)}', space=smem, size = 0x200, scoped, tag = 'prefetched SMEM operand 0']
  %s0 = inlined_call_operand.<no memory space> [shape: s32[1], index: 0, kind: input, shape index: {}]
  %s1 = inlined_call_operand.hbm [shape: f32[32,2,32], index: 1, kind: input, shape index: {}, may-alias: {1,3}]
  %s2 = inlined_call_operand.vmem [shape: f32[64,32], index: 2, kind: input, shape index: {}]
  %s3 = inlined_call_operand.hbm [shape: f32[32,2,32], index: 3, kind: output, shape index: {}, may-alias: {1,3}]
  %s4 = sld [smem:[#allocation0]]
  $region45: #{tpu_custom_call.1} parent=0
    _
  %s6 = ssub.s32 1, %s4
  %s7 = scalar_select 0, %s6, %s4
  %8 = sst [smem:[#allocation3]] %s0
  $region1: #{tpu_custom_call.1} parent=0
    #allocation4 [shape = 'u8[16384]{0}', space=vmem, size = 0x4000, scoped, tag = 'input window, operand 1']
    #allocation5 [shape = 's32[2]{0}', space=sflag, size = 0x8, scoped, tag = 'scoped memory for tpu_custom_call.1']
    #allocation6 [shape = 's32[2]{0}', space=sflag, size = 0x8, scoped, tag = 'scoped memory for tpu_custom_call.1']
    #allocation7 [shape = 'u8[16384]{0}', space=vmem, size = 0x4000, scoped, tag = 'output window, operand 0']
    %9 = vsyncpa [#allocation5], 0
    %s10 = scalar_lea.sflag [#allocation5], 1
    %11 = vsyncpa %s10, 0
    %12 = vsyncpa [#allocation6], 0
    %s13 = scalar_lea.sflag [#allocation6], 1
    %14 = vsyncpa %s13, 0
    loop: start=0, step=1, limit=6
    $region2: #{tpu_custom_call.1} parent=1 // loop_pre_header
      _
    $region3: #{tpu_custom_call.1} parent=1 // loop_header
      %s16 = sphi 0, %s20
      %p17 = scmp.ge.s32.totalorder %s16, 6
      %s26 = sphi 0, %s28
      %s29 = sphi 0, %s26
      %s30 = sphi 0, %s29
      %s46 = sphi 0, %s30
      %s52 = sphi 0, %s54
      %s55 = sphi 0, %s52
      %s56 = sphi 0, %s55
      %s72 = sphi 0, %s56
      %s78 = sphi 0, %s80
      %s81 = sphi 0, %s78
      %s82 = sphi 0, %s81
      %s98 = sphi 0, %s82
    $region4: #{tpu_custom_call.1} parent=1 // loop_header_branch
      %19 = sbr.rel (%p17) target = $region8
    $region5: #{tpu_custom_call.1} parent=1 // loop_body
      %s21 = ssub.s32 %s16, 1
      %s22 = ssub.s32 %s16, 2
      %s23 = sadd.s32 %s16, 1
      %s24 = ssub.s32 %s16, %s23
      %p25 = scmp.eq.s32.totalorder %s24, 0
      %s27 = sadd.s32 %s26, 1
      %s28 = scalar_select %p25, %s26, %s27
      %p31 = pneg %p25
      %p32 = scmp.eq.s32.totalorder %s16, 3
      %p33 = por %p31, %p32
      %p34 = scmp.ne.s32.totalorder %s26, %s29
      %p35 = scmp.eq.s32.totalorder %s16, 0
      %p36 = por %p34, %p35
      %p37 = scmp.ne.s32.totalorder %s26, %s29
      %p38 = scmp.eq.s32.totalorder %s21, 3
      %p39 = por %p37, %p38
      %p40 = scmp.ne.s32.totalorder %s29, %s30
      %p41 = scmp.eq.s32.totalorder %s21, 0
      %p42 = por %p40, %p41
      %p43 = scmp.ne.s32.totalorder %s29, %s30
      %p44 = scmp.eq.s32.totalorder %s22, 3
      %p45 = por %p43, %p44
      %p47 = scmp.ne.s32.totalorder %s30, %s46
      %p48 = scmp.eq.s32.totalorder %s22, 0
      %p49 = por %p47, %p48
      %s50 = ssub.s32 %s16, %s23
      %p51 = scmp.eq.s32.totalorder %s50, 0
      %s53 = sadd.s32 %s52, 1
      %s54 = scalar_select %p51, %s52, %s53
      %p57 = pneg %p51
      %p58 = scmp.eq.s32.totalorder %s16, 3
      %p59 = por %p57, %p58
      %p60 = scmp.ne.s32.totalorder %s52, %s55
      %p61 = scmp.eq.s32.totalorder %s16, 0
      %p62 = por %p60, %p61
      %p63 = scmp.ne.s32.totalorder %s52, %s55
      %p64 = scmp.eq.s32.totalorder %s21, 3
      %p65 = por %p63, %p64
      %p66 = scmp.ne.s32.totalorder %s55, %s56
      %p67 = scmp.eq.s32.totalorder %s21, 0
      %p68 = por %p66, %p67
      %p69 = scmp.ne.s32.totalorder %s55, %s56
      %p70 = scmp.eq.s32.totalorder %s22, 3
      %p71 = por %p69, %p70
      %p73 = scmp.ne.s32.totalorder %s56, %s72
      %p74 = scmp.eq.s32.totalorder %s22, 0
      %p75 = por %p73, %p74
      %s76 = ssub.s32 %s16, %s23
      %p77 = scmp.eq.s32.totalorder %s76, 0
      %s79 = sadd.s32 %s78, 1
      %s80 = scalar_select %p77, %s78, %s79
      %p83 = pneg %p77
      %p84 = scmp.eq.s32.totalorder %s16, 3
      %p85 = por %p83, %p84
      %p86 = scmp.ne.s32.totalorder %s78, %s81
      %p87 = scmp.eq.s32.totalorder %s16, 0
      %p88 = por %p86, %p87
      %p89 = scmp.ne.s32.totalorder %s78, %s81
      %p90 = scmp.eq.s32.totalorder %s21, 3
      %p91 = por %p89, %p90
      %p92 = scmp.ne.s32.totalorder %s81, %s82
      %p93 = scmp.eq.s32.totalorder %s21, 0
      %p94 = por %p92, %p93
      %p95 = scmp.ne.s32.totalorder %s81, %s82
      %p96 = scmp.eq.s32.totalorder %s22, 3
      %p97 = por %p95, %p96
      %p99 = scmp.ne.s32.totalorder %s82, %s98
      %p100 = scmp.eq.s32.totalorder %s22, 0
      %p101 = por %p99, %p100
      %p102 = scmp.le.s32.totalorder 1, %s16
      %p103 = scmp.lt.s32.totalorder %s16, 5
      %p104 = pnand %p102, %p103
      %p105 = pneg %p104
      // Predicated region
      $region9: #{tpu_custom_call.1} parent=5 // pred_check
        _
      $region10: #{tpu_custom_call.1} parent=5 // pred_check_branch
        %107 = sbr.rel (%p104) target = $region12
      $region11: #{tpu_custom_call.1} parent=5 // pred_region
        %s108 = ssub.s32 %s16, 1
      $region12: #{tpu_custom_call.1} parent=5 // pred_fallthru
        _
      %p109 = scmp.lt.s32.totalorder %s16, 4
      // Predicated region
      $region13: #{tpu_custom_call.1} parent=5 // pred_check
        %p110 = pneg %p109
      $region14: #{tpu_custom_call.1} parent=5 // pred_check_branch
        %112 = sbr.rel (%p110) target = $region16
      $region15: #{tpu_custom_call.1} parent=5 // pred_region
        // Predicated region
        $region17: #{tpu_custom_call.1} parent=15 // pred_check
          %p113 = pneg %p36
        $region18: #{tpu_custom_call.1} parent=15 // pred_check_branch
          %115 = sbr.rel (%p113) target = $region20
        $region19: #{tpu_custom_call.1} parent=15 // pred_region
          %s116 = sand.u32 %s26, 1
          %s117 = scalar_lea.sflag [#allocation5], %s116
          %s118 = sand.u32 %s26, 1
          %s119 = smul.addr %s118, 16
          %s120 = scalar_lea.vmem [#allocation4], %s119
          %s121 = smul.u32 8, %s16
          %s123 = ssub.s32 256, 256
          %124 = vsyncadd %s117, %s123
          %s125 = smul.addr %s121, 32
          %s126 = scalar_lea.hbm %s1, %s125
          %s127 = sshll.u32 %s120, 4
          %s128 = int_to_ptr.vmem [resolvable:$true] %s127
          %133 = dma.hbm_to_vmem [thread:$0]  %s126, 256, %s128, %s117, 32, 32, 2
        $region20: #{tpu_custom_call.1} parent=15 // pred_fallthru
          _
        // Predicated region
        $region21: #{tpu_custom_call.1} parent=15 // pred_check
          %p134 = pneg %p62
        $region22: #{tpu_custom_call.1} parent=15 // pred_check_branch
          %136 = sbr.rel (%p134) target = $region24
        $region23: #{tpu_custom_call.1} parent=15 // pred_region
          %p137 = scmp.lt.s32.totalorder %s16, 7
          %s138 = scalar_select %p137, %s16, 7
          %s139 = smul.addr %s138, 8
          %s140 = scalar_lea.vmem %s2, %s139
        $region24: #{tpu_custom_call.1} parent=15 // pred_fallthru
          _
      $region16: #{tpu_custom_call.1} parent=5 // pred_fallthru
        _
      %p141 = scmp.le.s32.totalorder 1, %s16
      %p142 = scmp.lt.s32.totalorder %s16, 5
      %p143 = pnand %p141, %p142
      %p144 = pneg %p143
      // Predicated region
      $region25: #{tpu_custom_call.1} parent=5 // pred_check
        _
      $region26: #{tpu_custom_call.1} parent=5 // pred_check_branch
        %146 = sbr.rel (%p143) target = $region28
      $region27: #{tpu_custom_call.1} parent=5 // pred_region
        %s147 = ssub.s32 %s16, 1
        %s148 = sand.u32 %s29, 1
        %s149 = scalar_lea.sflag [#allocation5], %s148
        %s150 = sand.u32 %s29, 1
        %s151 = smul.addr %s150, 16
        %s152 = scalar_lea.vmem [#allocation4], %s151
        // Predicated region
        $region29: #{tpu_custom_call.1} parent=27 // pred_check
          %p153 = pneg %p42
        $region30: #{tpu_custom_call.1} parent=27 // pred_check_branch
          %155 = sbr.rel (%p153) target = $region32
        $region31: #{tpu_custom_call.1} parent=27 // pred_region
          %156 = dma.done %s149, 256
        $region32: #{tpu_custom_call.1} parent=27 // pred_fallthru
          _
        %s157 = sand.u32 %s29, 1
        %s158 = scalar_lea.sflag [#allocation5], %s157
        %s159 = sand.u32 %s29, 1
        %s160 = smul.addr %s159, 16
        %s161 = scalar_lea.vmem [#allocation4], %s160
        %p162 = pneg %p42
        %p163 = pneg %p39
        %p164 = scmp.lt.s32.totalorder %s21, 7
        %s165 = scalar_select %p164, %s21, 7
        %s166 = smul.addr %s165, 8
        %s167 = scalar_lea.vmem %s2, %s166
        %p168 = pneg %p68
        %p169 = pneg %p65
        %p170 = pneg %p94
        %p171 = pneg %p91
        %s172 = sand.u32 %s81, 1
        %s173 = scalar_lea.sflag [#allocation6], %s172
        %s174 = sand.u32 %s81, 1
        %s175 = smul.addr %s174, 16
        %s176 = scalar_lea.vmem [#allocation7], %s175
        %s177 = smul.u32 8, %s21
        %p178 = scmp.lt.s32.totalorder %s21, 7
        %s179 = scalar_select %p178, %s21, 7
        %s180 = smul.addr %s179, 8
        %s181 = scalar_lea.vmem %s2, %s180
        %s182 = smul.u32 8, %s21
        %v183 = vld [vmem:[%s152] sm:$0x3]
        %v184 = vld [vmem:[%s152 + $0x2] sm:$0x3]
        %v185 = vld [vmem:[%s152 + $0x4] sm:$0x3]
        %v186 = vld [vmem:[%s152 + $0x6] sm:$0x3]
        %v187 = vld [vmem:[%s152 + $0x8] sm:$0x3]
        %v188 = vld [vmem:[%s152 + $0xa] sm:$0x3]
        %v189 = vld [vmem:[%s152 + $0xc] sm:$0x3]
        %v190 = vld [vmem:[%s152 + $0xe] sm:$0x3]
        %v191 = vld [vmem:[%s181] sm:$0xff]
        %v193 = vcombine.high %v191, %v191
        %v195 = vunpack.c.l.s4 1966171168
        %v196 = vunpack.c.0.s8 %v195
        %v197 = vlaneseq
        %v198 = vshrl.u32 %v197, 7
        %v199 = vsub.s32 %v196, %v198
        %v200 = vrot.slane %v191, %v199
        %v202 = vunpack.c.l.s4 1966171168
        %v203 = vunpack.c.0.s8 %v202
        %v204 = vlaneseq
        %v205 = vshrl.u32 %v204, 7
        %v206 = vsub.s32 %v203, %v205
        %v207 = vrot.slane %v193, %v206
        %v208 = vcombine.high %v200, %v200
        %v209 = vcombine.high %v207, %v207
        %v211 = vunpack.c.l.s4 1966171168
        %v212 = vunpack.c.0.s8 %v211
        %v213 = vlaneseq
        %v214 = vshrl.u32 %v213, 7
        %v215 = vsub.s32 %v212, %v214
        %v216 = vrot.slane %v200, %v215
        %v218 = vunpack.c.l.s4 1966171168
        %v219 = vunpack.c.0.s8 %v218
        %v220 = vlaneseq
        %v221 = vshrl.u32 %v220, 7
        %v222 = vsub.s32 %v219, %v221
        %v223 = vrot.slane %v207, %v222
        %v225 = vunpack.c.l.s4 1966171168
        %v226 = vunpack.c.0.s8 %v225
        %v227 = vlaneseq
        %v228 = vshrl.u32 %v227, 7
        %v229 = vsub.s32 %v226, %v228
        %v230 = vrot.slane %v208, %v229
        %v232 = vunpack.c.l.s4 1966171168
        %v233 = vunpack.c.0.s8 %v232
        %v234 = vlaneseq
        %v235 = vshrl.u32 %v234, 7
        %v236 = vsub.s32 %v233, %v235
        %v237 = vrot.slane %v209, %v236
        %v238 = vcombine.high %v216, %v216
        %v239 = vcombine.high %v223, %v223
        %v240 = vcombine.high %v230, %v230
        %v241 = vcombine.high %v237, %v237
        %v242 = vlaneseq
        %v243 = vshrl.u32 %v242, 7
        %v244 = vsub.s32 0, %v243
        %v245 = vrot.slane %v216, %v244
        %v246 = vlaneseq
        %v247 = vshrl.u32 %v246, 7
        %v248 = vsub.s32 0, %v247
        %v249 = vrot.slane %v230, %v248
        %v250 = vlaneseq
        %v251 = vshrl.u32 %v250, 7
        %v252 = vsub.s32 0, %v251
        %v253 = vrot.slane %v238, %v252
        %v254 = vlaneseq
        %v255 = vshrl.u32 %v254, 7
        %v256 = vsub.s32 0, %v255
        %v257 = vrot.slane %v240, %v256
        %v258 = vlaneseq
        %v259 = vshrl.u32 %v258, 7
        %v260 = vsub.s32 0, %v259
        %v261 = vrot.slane %v223, %v260
        %v262 = vlaneseq
        %v263 = vshrl.u32 %v262, 7
        %v264 = vsub.s32 0, %v263
        %v265 = vrot.slane %v237, %v264
        %v266 = vlaneseq
        %v267 = vshrl.u32 %v266, 7
        %v268 = vsub.s32 0, %v267
        %v269 = vrot.slane %v239, %v268
        %v270 = vlaneseq
        %v271 = vshrl.u32 %v270, 7
        %v272 = vsub.s32 0, %v271
        %v273 = vrot.slane %v241, %v272
        %v282 = vadd.f32 %v183, %v245
        %v283 = vadd.f32 %v184, %v249
        %v284 = vadd.f32 %v185, %v253
        %v285 = vadd.f32 %v186, %v257
        %v286 = vadd.f32 %v187, %v261
        %v287 = vadd.f32 %v188, %v265
        %v288 = vadd.f32 %v189, %v269
        %v289 = vadd.f32 %v190, %v273
        %vm290 = vcmask 254976
        %291 = vst.msk [vmem:[%s176] sm:$0x3] %vm290, %v282
        %292 = vst.msk [vmem:[%s176 + $0x2] sm:$0x3] %vm290, %v283
        %293 = vst.msk [vmem:[%s176 + $0x4] sm:$0x3] %vm290, %v284
        %294 = vst.msk [vmem:[%s176 + $0x6] sm:$0x3] %vm290, %v285
        %295 = vst.msk [vmem:[%s176 + $0x8] sm:$0x3] %vm290, %v286
        %296 = vst.msk [vmem:[%s176 + $0xa] sm:$0x3] %vm290, %v287
        %297 = vst.msk [vmem:[%s176 + $0xc] sm:$0x3] %vm290, %v288
        %298 = vst.msk [vmem:[%s176 + $0xe] sm:$0x3] %vm290, %v289
        %s299 = sand.u32 %s81, 1
        %s300 = scalar_lea.sflag [#allocation6], %s299
        %s301 = sand.u32 %s81, 1
        %s302 = smul.addr %s301, 16
        %s303 = scalar_lea.vmem [#allocation7], %s302
        // Predicated region
        $region33: #{tpu_custom_call.1} parent=27 // pred_check
          %p304 = pneg %p91
        $region34: #{tpu_custom_call.1} parent=27 // pred_check_branch
          %306 = sbr.rel (%p304) target = $region36
        $region35: #{tpu_custom_call.1} parent=27 // pred_region
          %s307 = smul.u32 8, %s21
          %s309 = ssub.s32 256, 256
          %310 = vsyncadd %s300, %s309
          %s311 = smul.addr %s307, 32
          %s312 = scalar_lea.hbm %s3, %s311
          %s313 = sshll.u32 %s303, 4
          %s314 = int_to_ptr.vmem [resolvable:$true] %s313
          %319 = dma.vmem_to_hbm [thread:$0]  %s314, 256, %s312, %s300, 32, 32, 2
        $region36: #{tpu_custom_call.1} parent=27 // pred_fallthru
          _
      $region28: #{tpu_custom_call.1} parent=5 // pred_fallthru
        _
      %p320 = scmp.le.s32.totalorder 2, %s16
      // Predicated region
      $region37: #{tpu_custom_call.1} parent=5 // pred_check
        %p321 = pneg %p320
      $region38: #{tpu_custom_call.1} parent=5 // pred_check_branch
        %323 = sbr.rel (%p321) target = $region40
      $region39: #{tpu_custom_call.1} parent=5 // pred_region
        %s324 = ssub.s32 %s16, 2
        // Predicated region
        $region41: #{tpu_custom_call.1} parent=39 // pred_check
          %p325 = pneg %p97
        $region42: #{tpu_custom_call.1} parent=39 // pred_check_branch
          %327 = sbr.rel (%p325) target = $region44
        $region43: #{tpu_custom_call.1} parent=39 // pred_region
          %s328 = sand.u32 %s82, 1
          %s329 = scalar_lea.sflag [#allocation6], %s328
          %s330 = sand.u32 %s82, 1
          %s331 = smul.addr %s330, 16
          %s332 = scalar_lea.vmem [#allocation7], %s331
          %333 = dma.done %s329, 256
        $region44: #{tpu_custom_call.1} parent=39 // pred_fallthru
          _
      $region40: #{tpu_custom_call.1} parent=5 // pred_fallthru
        _
    $region6: #{tpu_custom_call.1} parent=1 // loop_footer
      %s20 = sadd.s32 1, %s16
    $region7: #{tpu_custom_call.1} parent=1 // loop_footer_branch
      %15 = sbr.rel target = $region3
    $region8: #{tpu_custom_call.1} parent=1 // loop_exit
      _
    %334 = vsyncpa [#allocation5], 1
    %s335 = scalar_lea.sflag [#allocation5], 1
    %336 = vsyncpa %s335, 1
    %337 = vsyncpa [#allocation6], 1
    %s338 = scalar_lea.sflag [#allocation6], 1
    %339 = vsyncpa %s338, 1

</llo_original>
